<compile_context>
chip_gen: v5e
topology: v5e:2x2
jax: 0.10.0
libtpu: 0.0.40
codegen_flags: <defaults>
</compile_context>

<pallas_src>
import jax
import jax.numpy as jnp
from jax.experimental import pallas as pl
from jax.experimental.pallas import tpu as pltpu

LANE = 128


def _round_up(a, m):
    return (a + m - 1) // m * m


# ----------------------------------------------------------------------------
# Kernel
# ----------------------------------------------------------------------------
def mlp4proj_kernel(x_ref, w1_ref, b1_ref, w2_ref, b2_ref, w3r_ref, b3r_ref,
                    o_ref):
    cdt = w1_ref.dtype                       # compute dtype (bf16)
    x = x_ref[...].astype(cdt)               # (tile_m, din_p)

    # Layer 1: Linear + ReLU (Dropout = identity in eval).  f32 accumulation.
    h = jnp.dot(x, w1_ref[...], preferred_element_type=jnp.float32) + b1_ref[...]
    h = jnp.maximum(h, 0.0)

    # Layer 2: Linear + ReLU.
    h = jnp.dot(h.astype(cdt), w2_ref[...],
                preferred_element_type=jnp.float32) + b2_ref[...]
    h = jnp.maximum(h, 0.0)

    # Layer 3 + residual, fused: [h | x] @ [W3; Wr] + (b3 + br).
    hx = jnp.concatenate([h.astype(cdt), x], axis=-1)
    y = jnp.dot(hx, w3r_ref[...],
                preferred_element_type=jnp.float32) + b3r_ref[...]

    o_ref[...] = jnp.maximum(y, 0.0).astype(o_ref.dtype)


# ----------------------------------------------------------------------------
# One-time parameter preparation (pad to lane multiples + cast to bf16)
# ----------------------------------------------------------------------------
def prepare_params(params, compute_dtype=jnp.bfloat16):
    """Pad/cast MLP4Proj parameters once, hoisted out of the forward path."""
    w1, b1, w2, b2, w3, b3, wr, br = params
    dim_in, dim_mid = w1.shape
    dim_out = w3.shape[1]
    din_p, dmid_p, dout_p = (_round_up(d, LANE) for d in (dim_in, dim_mid, dim_out))

    def pad_w(w, rows, cols):
        out = jnp.zeros((rows, cols), compute_dtype)
        return out.at[:w.shape[0], :w.shape[1]].set(w.astype(compute_dtype))

    def pad_b(b, cols):
        out = jnp.zeros((1, cols), jnp.float32)
        return out.at[0, :b.shape[0]].set(b.astype(jnp.float32))

    w1p, b1p = pad_w(w1, din_p, dmid_p), pad_b(b1, dmid_p)
    w2p, b2p = pad_w(w2, dmid_p, dmid_p), pad_b(b2, dmid_p)

    # Fused layer-3 + residual weight: [W3; Wr] stacked along K; bias b3 + br.
    w3r = jnp.zeros((dmid_p + din_p, dout_p), compute_dtype)
    w3r = w3r.at[:dim_mid, :dim_out].set(w3.astype(compute_dtype))
    w3r = w3r.at[dmid_p:dmid_p + dim_in, :dim_out].set(wr.astype(compute_dtype))
    b3rp = pad_b(b3 + br, dout_p)

    return {
        "weights": (w1p, b1p, w2p, b2p, w3r, b3rp),
        "dims": (dim_in, dim_mid, dim_out),
        "padded_dims": (din_p, dmid_p, dout_p),
        "compute_dtype": compute_dtype,
    }


def _pick_tile_m(N, din_p, dmid_p, dout_p):
    # Large tiles amortize the ~0.35 us per-grid-step overhead (measured 256-wide
    # tiles ~63% of HBM roofline, 512 -> 85%, 1024 -> 86%).  Cap so (a) per-tile
    # VMEM intermediates stay modest, (b) the grid keeps >= 2 steps when N
    # permits (v7x has 2 TensorCores), (c) tiny N isn't grossly row-padded.
    # Multiples of 16 -> clean bf16 sublane packing (and /128 for the MXU).
    tile_m = 256
    for cand in (1024, 512, 256):
        per_tile = cand * (dmid_p * 4 + (dmid_p + din_p) * 2 + dout_p * 4
                           + 2 * (din_p * 4 + dout_p * 2))
        if per_tile <= (16 << 20):
            tile_m = cand
            break
    cap = max(16, _round_up(max(N // 2, 1), 16))
    return min(tile_m, cap)


# ----------------------------------------------------------------------------
# Forward wrapper
# ----------------------------------------------------------------------------
def mlp4proj_forward(x, prepared, *, tile_m=None):
    """x: (B, S, dim_in). Returns (B, S, dim_out) in x.dtype."""
    w1p, b1p, w2p, b2p, w3rp, b3rp = prepared["weights"]
    dim_in, dim_mid, dim_out = prepared["dims"]
    din_p, dmid_p, dout_p = prepared["padded_dims"]
    cdt = prepared["compute_dtype"]

    B, S, xin = x.shape
    assert xin == dim_in
    N = B * S

    if tile_m is None:
        tile_m = _pick_tile_m(N, din_p, dmid_p, dout_p)
    assert tile_m % 16 == 0, "tile_m must be a multiple of 16 (bf16 sublane packing)"

    n_pad = _round_up(N, tile_m)
    x_flat = x.reshape(N, dim_in)

    # Fast path: consume x directly (kernel casts to bf16).  Otherwise build one
    # padded bf16 copy (zero-filled columns keep the matmul exact: padded weight
    # rows are zero, and explicit zero fill avoids NaN*0 contamination).
    if dim_in == din_p and N == n_pad:
        x2 = x_flat
    else:
        x2 = jnp.zeros((n_pad, din_p), cdt).at[:N, :dim_in].set(
            x_flat.astype(cdt))

    bpe_w = jnp.dtype(cdt).itemsize
    bpe_x = x2.dtype.itemsize
    bpe_out = jnp.dtype(jnp.bfloat16).itemsize

    weight_bytes = (din_p * dmid_p + dmid_p * dmid_p
                    + (dmid_p + din_p) * dout_p) * bpe_w
    bias_bytes = (2 * dmid_p + dout_p) * 4
    io_bytes = 2 * tile_m * (din_p * bpe_x + dout_p * bpe_out)   # dbl-buffered I/O tiles
    inter_bytes = tile_m * (dmid_p * 4 + (dmid_p + din_p) * bpe_w + dout_p * 4)

    # Generation-aware VMEM ceiling (64 MiB/TC on v7x, 128 MiB on v5e/v6e).
    try:
        vmem_cap = int(pltpu.get_tpu_info().vmem_capacity_bytes)
    except Exception:
        vmem_cap = 64 << 20            # conservative default (v7x per-TC)
    vmem_ceiling = vmem_cap - (16 << 20)

    vmem_need_single = weight_bytes + bias_bytes + io_bytes + inter_bytes
    if vmem_need_single > vmem_ceiling:
        # TODO(synk): K-tiled / streamed-weight fallback for very large dim_mid.
        raise ValueError(
            f"MLP4Proj resident-weight footprint ({vmem_need_single >> 20} MiB) "
            f"exceeds the VMEM budget ({vmem_ceiling >> 20} MiB).")

    # Cost hint for the XLA scheduler (bf16 output, weights counted once).
    flops = 2 * n_pad * (din_p * dmid_p + dmid_p * dmid_p
                         + (dmid_p + din_p) * dout_p)
    bytes_accessed = (x2.size * bpe_x + weight_bytes + bias_bytes
                      + n_pad * dout_p * bpe_out)
    cost = pl.CostEstimate(flops=flops, transcendentals=0,
                           bytes_accessed=bytes_accessed)

    grid = (n_pad // tile_m,)

    def build(single_buffer_weights):
        wmult = 1 if single_buffer_weights else 2
        vmem_need = wmult * (weight_bytes + bias_bytes) + io_bytes + inter_bytes
        vmem_limit = int(min(max(vmem_need + (8 << 20), 32 << 20), vmem_ceiling))

        if single_buffer_weights:
            # Constant index_map -> the block never changes; single-buffer it.
            resident = lambda r, c: pl.BlockSpec(
                (r, c), lambda i: (0, 0), pipeline_mode=pl.Buffered(1))
        else:
            resident = lambda r, c: pl.BlockSpec((r, c), lambda i: (0, 0))

        return pl.pallas_call(
            mlp4proj_kernel,
            out_shape=jax.ShapeDtypeStruct((n_pad, dout_p), jnp.bfloat16),
            grid_spec=pltpu.PrefetchScalarGridSpec(
                num_scalar_prefetch=0,
                grid=grid,
                in_specs=[
                    pl.BlockSpec((tile_m, din_p), lambda i: (i, 0)),   # x rows
                    resident(din_p, dmid_p),                           # W1
                    resident(1, dmid_p),                               # b1
                    resident(dmid_p, dmid_p),                          # W2
                    resident(1, dmid_p),                               # b2
                    resident(dmid_p + din_p, dout_p),                  # [W3; Wr]
                    resident(1, dout_p),                               # b3 + br
                ],
                out_specs=pl.BlockSpec((tile_m, dout_p), lambda i: (i, 0)),
            ),
            compiler_params=pltpu.CompilerParams(
                dimension_semantics=("parallel",),
                vmem_limit_bytes=vmem_limit),
            cost_estimate=cost,
        )

    try:
        out = build(True)(x2, w1p, b1p, w2p, b2p, w3rp, b3rp)
    except Exception:
        # Fallback for jax versions that reject pipeline_mode=pl.Buffered(1):
        # default double-buffered resident weights (correct, just more VMEM).
        out = build(False)(x2, w1p, b1p, w2p, b2p, w3rp, b3rp)

    y = out[:N, :dim_out]
    if y.dtype != x.dtype:
        y = y.astype(x.dtype)
    return y.reshape(B, S, dim_out)


# ----------------------------------------------------------------------------
# Reference / init helpers (demo)
# ----------------------------------------------------------------------------
def init_params(key, dim_in, dim_out):
    """Deterministic init mimicking PyTorch Linear's U(-1/sqrt(fan_in), +)."""
    dim_mid = (dim_in + dim_out) // 2
    ks = jax.random.split(key, 8)

    def lin(kw, kb, fan_in, fan_out):
        bound = 1.0 / (fan_in ** 0.5)
        w = jax.random.uniform(kw, (fan_in, fan_out), jnp.float32, -bound, bound)
        b = jax.random.uniform(kb, (fan_out,), jnp.float32, -bound, bound)
        return w, b

    w1, b1 = lin(ks[0], ks[1], dim_in, dim_mid)
    w2, b2 = lin(ks[2], ks[3], dim_mid, dim_mid)
    w3, b3 = lin(ks[4], ks[5], dim_mid, dim_out)
    wr, br = lin(ks[6], ks[7], dim_in, dim_out)
    return (w1, b1, w2, b2, w3, b3, wr, br)


def reference_forward(x, params):
    """Pure-JAX f32 reference of the PyTorch forward (eval mode)."""
    w1, b1, w2, b2, w3, b3, wr, br = params
    h = jax.nn.relu(x @ w1 + b1)
    h = jax.nn.relu(h @ w2 + b2)
    m = h @ w3 + b3
    r = x @ wr + br
    return jax.nn.relu(m + r)


if __name__ == "__main__":
    key = jax.random.PRNGKey(0)
    k_x, k_p = jax.random.split(key)

    B, S = 2, 8                # batch, sequence
    dim_in, dim_out = 32, 32   # dim_mid = (32 + 32) // 2 = 32

    x = jax.random.normal(k_x, (B, S, dim_in), jnp.float32)
    params = init_params(k_p, dim_in, dim_out)

    prepared = prepare_params(params)      # one-time pad + bf16 cast (hoisted)
    y = mlp4proj_forward(x, prepared)
    y = jax.block_until_ready(y)

    y_ref = reference_forward(x, params)
    assert y.shape == (B, S, dim_out)
    # bf16 MXU operands / bf16 kernel output with f32 accumulation.
    assert jnp.allclose(y, y_ref, atol=3e-2, rtol=3e-2), "mismatch vs reference"

    print("KERNEL_OK")
</pallas_src>

<mosaic_0001>
module attributes {stable_mosaic.version = 11 : i64} {
  func.func @mlp4proj_kernel(%arg0: i32, %arg1: memref<16x128xbf16, #tpu.memory_space<vmem>>, %arg2: memref<128x128xbf16, #tpu.memory_space<vmem>>, %arg3: memref<1x128xf32, #tpu.memory_space<vmem>>, %arg4: memref<128x128xbf16, #tpu.memory_space<vmem>>, %arg5: memref<1x128xf32, #tpu.memory_space<vmem>>, %arg6: memref<256x128xbf16, #tpu.memory_space<vmem>>, %arg7: memref<1x128xf32, #tpu.memory_space<vmem>>, %arg8: memref<16x128xbf16, #tpu.memory_space<vmem>>) attributes {dimension_semantics = [#tpu.dimension_semantics<parallel>], iteration_bounds = array<i64: 1>, scalar_prefetch = 0 : i64, scratch_operands = 0 : i64, tpu.core_type = #tpu.core_type<tc>, window_params = [{transform_indices = @transform_0, window_bounds = array<i64: 16, 128>}, {pipeline_mode = #tpu.pipeline_mode<synchronous>, transform_indices = @transform_1, window_bounds = array<i64: 128, 128>}, {pipeline_mode = #tpu.pipeline_mode<synchronous>, transform_indices = @transform_2, window_bounds = array<i64: 1, 128>}, {pipeline_mode = #tpu.pipeline_mode<synchronous>, transform_indices = @transform_3, window_bounds = array<i64: 128, 128>}, {pipeline_mode = #tpu.pipeline_mode<synchronous>, transform_indices = @transform_4, window_bounds = array<i64: 1, 128>}, {pipeline_mode = #tpu.pipeline_mode<synchronous>, transform_indices = @transform_5, window_bounds = array<i64: 256, 128>}, {pipeline_mode = #tpu.pipeline_mode<synchronous>, transform_indices = @transform_6, window_bounds = array<i64: 1, 128>}, {transform_indices = @transform_7, window_bounds = array<i64: 16, 128>}]} {
    %c0 = arith.constant 0 : index
    %c0_0 = arith.constant 0 : index
    %0 = vector.load %arg1[%c0, %c0_0] : memref<16x128xbf16, #tpu.memory_space<vmem>>, vector<16x128xbf16>
    %c0_1 = arith.constant 0 : index
    %c0_2 = arith.constant 0 : index
    %1 = vector.load %arg2[%c0_1, %c0_2] : memref<128x128xbf16, #tpu.memory_space<vmem>>, vector<128x128xbf16>
    %cst = arith.constant dense<0.000000e+00> : vector<16x128xf32>
    %2 = tpu.matmul %0, %1, %cst {dimension_numbers = #tpu.dot_dimension_numbers<[1], [0], [0], [1], [0, 0, 1, 1], [], []>} : vector<16x128xbf16>, vector<128x128xbf16>, vector<16x128xf32> -> vector<16x128xf32>
    %c0_3 = arith.constant 0 : index
    %c0_4 = arith.constant 0 : index
    %3 = vector.load %arg3[%c0_3, %c0_4] : memref<1x128xf32, #tpu.memory_space<vmem>>, vector<1x128xf32>
    %4 = vector.broadcast %3 : vector<1x128xf32> to vector<16x128xf32>
    %5 = arith.addf %2, %4 : vector<16x128xf32>
    %cst_5 = arith.constant 0.000000e+00 : f32
    %6 = vector.broadcast %cst_5 : f32 to vector<16x128xf32>
    %7 = arith.maximumf %5, %6 : vector<16x128xf32>
    %8 = arith.truncf %7 : vector<16x128xf32> to vector<16x128xbf16>
    %c0_6 = arith.constant 0 : index
    %c0_7 = arith.constant 0 : index
    %9 = vector.load %arg4[%c0_6, %c0_7] : memref<128x128xbf16, #tpu.memory_space<vmem>>, vector<128x128xbf16>
    %cst_8 = arith.constant dense<0.000000e+00> : vector<16x128xf32>
    %10 = tpu.matmul %8, %9, %cst_8 {dimension_numbers = #tpu.dot_dimension_numbers<[1], [0], [0], [1], [0, 0, 1, 1], [], []>} : vector<16x128xbf16>, vector<128x128xbf16>, vector<16x128xf32> -> vector<16x128xf32>
    %c0_9 = arith.constant 0 : index
    %c0_10 = arith.constant 0 : index
    %11 = vector.load %arg5[%c0_9, %c0_10] : memref<1x128xf32, #tpu.memory_space<vmem>>, vector<1x128xf32>
    %12 = vector.broadcast %11 : vector<1x128xf32> to vector<16x128xf32>
    %13 = arith.addf %10, %12 : vector<16x128xf32>
    %cst_11 = arith.constant 0.000000e+00 : f32
    %14 = vector.broadcast %cst_11 : f32 to vector<16x128xf32>
    %15 = arith.maximumf %13, %14 : vector<16x128xf32>
    %16 = arith.truncf %15 : vector<16x128xf32> to vector<16x128xbf16>
    %17 = tpu.concatenate %16, %0 in 1 : vector<16x128xbf16>, vector<16x128xbf16> -> vector<16x256xbf16>
    %c0_12 = arith.constant 0 : index
    %c0_13 = arith.constant 0 : index
    %18 = vector.load %arg6[%c0_12, %c0_13] : memref<256x128xbf16, #tpu.memory_space<vmem>>, vector<256x128xbf16>
    %cst_14 = arith.constant dense<0.000000e+00> : vector<16x128xf32>
    %19 = tpu.matmul %17, %18, %cst_14 {dimension_numbers = #tpu.dot_dimension_numbers<[1], [0], [0], [1], [0, 0, 1, 1], [], []>} : vector<16x256xbf16>, vector<256x128xbf16>, vector<16x128xf32> -> vector<16x128xf32>
    %c0_15 = arith.constant 0 : index
    %c0_16 = arith.constant 0 : index
    %20 = vector.load %arg7[%c0_15, %c0_16] : memref<1x128xf32, #tpu.memory_space<vmem>>, vector<1x128xf32>
    %21 = vector.broadcast %20 : vector<1x128xf32> to vector<16x128xf32>
    %22 = arith.addf %19, %21 : vector<16x128xf32>
    %cst_17 = arith.constant 0.000000e+00 : f32
    %23 = vector.broadcast %cst_17 : f32 to vector<16x128xf32>
    %24 = arith.maximumf %22, %23 : vector<16x128xf32>
    %25 = arith.truncf %24 : vector<16x128xf32> to vector<16x128xbf16>
    %c0_18 = arith.constant 0 : index
    %c0_19 = arith.constant 0 : index
    %26 = vector.load %arg8[%c0_18, %c0_19] : memref<16x128xbf16, #tpu.memory_space<vmem>>, vector<16x128xbf16>
    tpu.vector_store %arg8[%c0_18, %c0_19], %25 {strides = array<i32>} : memref<16x128xbf16, #tpu.memory_space<vmem>>, vector<16x128xbf16>,
    return
  }
  func.func @transform_0(%arg0: i32) -> (i32, i32) {
    %c0_i32 = arith.constant 0 : i32
    %c0_i32_0 = arith.constant 0 : i32
    return %arg0, %c0_i32 : i32, i32
  }
  func.func @transform_1(%arg0: i32) -> (i32, i32) {
    %c0_i32 = arith.constant 0 : i32
    %c0_i32_0 = arith.constant 0 : i32
    %c0_i32_1 = arith.constant 0 : i32
    return %c0_i32, %c0_i32_0 : i32, i32
  }
  func.func @transform_2(%arg0: i32) -> (i32, i32) {
    %c0_i32 = arith.constant 0 : i32
    %c0_i32_0 = arith.constant 0 : i32
    %c0_i32_1 = arith.constant 0 : i32
    return %c0_i32, %c0_i32_0 : i32, i32
  }
  func.func @transform_3(%arg0: i32) -> (i32, i32) {
    %c0_i32 = arith.constant 0 : i32
    %c0_i32_0 = arith.constant 0 : i32
    %c0_i32_1 = arith.constant 0 : i32
    return %c0_i32, %c0_i32_0 : i32, i32
  }
  func.func @transform_4(%arg0: i32) -> (i32, i32) {
    %c0_i32 = arith.constant 0 : i32
    %c0_i32_0 = arith.constant 0 : i32
    %c0_i32_1 = arith.constant 0 : i32
    return %c0_i32, %c0_i32_0 : i32, i32
  }
  func.func @transform_5(%arg0: i32) -> (i32, i32) {
    %c0_i32 = arith.constant 0 : i32
    %c0_i32_0 = arith.constant 0 : i32
    %c0_i32_1 = arith.constant 0 : i32
    return %c0_i32, %c0_i32_0 : i32, i32
  }
  func.func @transform_6(%arg0: i32) -> (i32, i32) {
    %c0_i32 = arith.constant 0 : i32
    %c0_i32_0 = arith.constant 0 : i32
    %c0_i32_1 = arith.constant 0 : i32
    return %c0_i32, %c0_i32_0 : i32, i32
  }
  func.func @transform_7(%arg0: i32) -> (i32, i32) {
    %c0_i32 = arith.constant 0 : i32
    %c0_i32_0 = arith.constant 0 : i32
    return %arg0, %c0_i32 : i32, i32
  }
}

module attributes {stable_mosaic.version = 11 : i64} {
  func.func @mlp4proj_kernel(%arg0: i32, %arg1: memref<16x128xbf16, #tpu.memory_space<vmem>>, %arg2: memref<128x128xbf16, #tpu.memory_space<vmem>>, %arg3: memref<1x128xf32, #tpu.memory_space<vmem>>, %arg4: memref<128x128xbf16, #tpu.memory_space<vmem>>, %arg5: memref<1x128xf32, #tpu.memory_space<vmem>>, %arg6: memref<256x128xbf16, #tpu.memory_space<vmem>>, %arg7: memref<1x128xf32, #tpu.memory_space<vmem>>, %arg8: memref<16x128xbf16, #tpu.memory_space<vmem>>) attributes {dimension_semantics = [#tpu.dimension_semantics<parallel>], iteration_bounds = array<i64: 1>, scalar_prefetch = 0 : i64, scratch_operands = 0 : i64, tpu.core_type = #tpu.core_type<tc>, window_params = [{transform_indices = @transform_0, window_bounds = array<i64: 16, 128>}, {pipeline_mode = #tpu.pipeline_mode<synchronous>, transform_indices = @transform_1, window_bounds = array<i64: 128, 128>}, {pipeline_mode = #tpu.pipeline_mode<synchronous>, transform_indices = @transform_2, window_bounds = array<i64: 1, 128>}, {pipeline_mode = #tpu.pipeline_mode<synchronous>, transform_indices = @transform_3, window_bounds = array<i64: 128, 128>}, {pipeline_mode = #tpu.pipeline_mode<synchronous>, transform_indices = @transform_4, window_bounds = array<i64: 1, 128>}, {pipeline_mode = #tpu.pipeline_mode<synchronous>, transform_indices = @transform_5, window_bounds = array<i64: 256, 128>}, {pipeline_mode = #tpu.pipeline_mode<synchronous>, transform_indices = @transform_6, window_bounds = array<i64: 1, 128>}, {transform_indices = @transform_7, window_bounds = array<i64: 16, 128>}]} {
    %c0 = arith.constant 0 : index
    %c0_0 = arith.constant 0 : index
    %0 = vector.load %arg1[%c0, %c0_0] : memref<16x128xbf16, #tpu.memory_space<vmem>>, vector<16x128xbf16>
    %c0_1 = arith.constant 0 : index
    %c0_2 = arith.constant 0 : index
    %1 = vector.load %arg2[%c0_1, %c0_2] : memref<128x128xbf16, #tpu.memory_space<vmem>>, vector<128x128xbf16>
    %cst = arith.constant dense<0.000000e+00> : vector<16x128xf32>
    %2 = tpu.matmul %0, %1, %cst {dimension_numbers = #tpu.dot_dimension_numbers<[1], [0], [0], [1], [0, 0, 1, 1], [], []>} : vector<16x128xbf16>, vector<128x128xbf16>, vector<16x128xf32> -> vector<16x128xf32>
    %c0_3 = arith.constant 0 : index
    %c0_4 = arith.constant 0 : index
    %3 = vector.load %arg3[%c0_3, %c0_4] : memref<1x128xf32, #tpu.memory_space<vmem>>, vector<1x128xf32>
    %4 = vector.broadcast %3 : vector<1x128xf32> to vector<16x128xf32>
    %5 = arith.addf %2, %4 : vector<16x128xf32>
    %cst_5 = arith.constant 0.000000e+00 : f32
    %6 = vector.broadcast %cst_5 : f32 to vector<16x128xf32>
    %7 = arith.maximumf %5, %6 : vector<16x128xf32>
    %8 = arith.truncf %7 : vector<16x128xf32> to vector<16x128xbf16>
    %c0_6 = arith.constant 0 : index
    %c0_7 = arith.constant 0 : index
    %9 = vector.load %arg4[%c0_6, %c0_7] : memref<128x128xbf16, #tpu.memory_space<vmem>>, vector<128x128xbf16>
    %cst_8 = arith.constant dense<0.000000e+00> : vector<16x128xf32>
    %10 = tpu.matmul %8, %9, %cst_8 {dimension_numbers = #tpu.dot_dimension_numbers<[1], [0], [0], [1], [0, 0, 1, 1], [], []>} : vector<16x128xbf16>, vector<128x128xbf16>, vector<16x128xf32> -> vector<16x128xf32>
    %c0_9 = arith.constant 0 : index
    %c0_10 = arith.constant 0 : index
    %11 = vector.load %arg5[%c0_9, %c0_10] : memref<1x128xf32, #tpu.memory_space<vmem>>, vector<1x128xf32>
    %12 = vector.broadcast %11 : vector<1x128xf32> to vector<16x128xf32>
    %13 = arith.addf %10, %12 : vector<16x128xf32>
    %cst_11 = arith.constant 0.000000e+00 : f32
    %14 = vector.broadcast %cst_11 : f32 to vector<16x128xf32>
    %15 = arith.maximumf %13, %14 : vector<16x128xf32>
    %16 = arith.truncf %15 : vector<16x128xf32> to vector<16x128xbf16>
    %17 = tpu.concatenate %16, %0 in 1 : vector<16x128xbf16>, vector<16x128xbf16> -> vector<16x256xbf16>
    %c0_12 = arith.constant 0 : index
    %c0_13 = arith.constant 0 : index
    %18 = vector.load %arg6[%c0_12, %c0_13] : memref<256x128xbf16, #tpu.memory_space<vmem>>, vector<256x128xbf16>
    %cst_14 = arith.constant dense<0.000000e+00> : vector<16x128xf32>
    %19 = tpu.matmul %17, %18, %cst_14 {dimension_numbers = #tpu.dot_dimension_numbers<[1], [0], [0], [1], [0, 0, 1, 1], [], []>} : vector<16x256xbf16>, vector<256x128xbf16>, vector<16x128xf32> -> vector<16x128xf32>
    %c0_15 = arith.constant 0 : index
    %c0_16 = arith.constant 0 : index
    %20 = vector.load %arg7[%c0_15, %c0_16] : memref<1x128xf32, #tpu.memory_space<vmem>>, vector<1x128xf32>
    %21 = vector.broadcast %20 : vector<1x128xf32> to vector<16x128xf32>
    %22 = arith.addf %19, %21 : vector<16x128xf32>
    %cst_17 = arith.constant 0.000000e+00 : f32
    %23 = vector.broadcast %cst_17 : f32 to vector<16x128xf32>
    %24 = arith.maximumf %22, %23 : vector<16x128xf32>
    %25 = arith.truncf %24 : vector<16x128xf32> to vector<16x128xbf16>
    %c0_18 = arith.constant 0 : index
    %c0_19 = arith.constant 0 : index
    %26 = vector.load %arg8[%c0_18, %c0_19] : memref<16x128xbf16, #tpu.memory_space<vmem>>, vector<16x128xbf16>
    tpu.vector_store %arg8[%c0_18, %c0_19], %25 {strides = array<i32>} : memref<16x128xbf16, #tpu.memory_space<vmem>>, vector<16x128xbf16>,
    return
  }
  func.func @transform_0(%arg0: i32) -> (i32, i32) {
    %c0_i32 = arith.constant 0 : i32
    %c0_i32_0 = arith.constant 0 : i32
    return %arg0, %c0_i32 : i32, i32
  }
  func.func @transform_1(%arg0: i32) -> (i32, i32) {
    %c0_i32 = arith.constant 0 : i32
    %c0_i32_0 = arith.constant 0 : i32
    %c0_i32_1 = arith.constant 0 : i32
    return %c0_i32, %c0_i32_0 : i32, i32
  }
  func.func @transform_2(%arg0: i32) -> (i32, i32) {
    %c0_i32 = arith.constant 0 : i32
    %c0_i32_0 = arith.constant 0 : i32
    %c0_i32_1 = arith.constant 0 : i32
    return %c0_i32, %c0_i32_0 : i32, i32
  }
  func.func @transform_3(%arg0: i32) -> (i32, i32) {
    %c0_i32 = arith.constant 0 : i32
    %c0_i32_0 = arith.constant 0 : i32
    %c0_i32_1 = arith.constant 0 : i32
    return %c0_i32, %c0_i32_0 : i32, i32
  }
  func.func @transform_4(%arg0: i32) -> (i32, i32) {
    %c0_i32 = arith.constant 0 : i32
    %c0_i32_0 = arith.constant 0 : i32
    %c0_i32_1 = arith.constant 0 : i32
    return %c0_i32, %c0_i32_0 : i32, i32
  }
  func.func @transform_5(%arg0: i32) -> (i32, i32) {
    %c0_i32 = arith.constant 0 : i32
    %c0_i32_0 = arith.constant 0 : i32
    %c0_i32_1 = arith.constant 0 : i32
    return %c0_i32, %c0_i32_0 : i32, i32
  }
  func.func @transform_6(%arg0: i32) -> (i32, i32) {
    %c0_i32 = arith.constant 0 : i32
    %c0_i32_0 = arith.constant 0 : i32
    %c0_i32_1 = arith.constant 0 : i32
    return %c0_i32, %c0_i32_0 : i32, i32
  }
  func.func @transform_7(%arg0: i32) -> (i32, i32) {
    %c0_i32 = arith.constant 0 : i32
    %c0_i32_0 = arith.constant 0 : i32
    return %arg0, %c0_i32 : i32, i32
  }
}

</mosaic_0001>

<llo_original>
// kernel: tpu_custom_call.1
$region0: #{tpu_custom_call.1}
  #allocation0 [shape = 'u32[]', space=smem, size = 0x4, offset = 0x4, fixed_abs, tag = 'smem constant byte address 0x4 - core index']
  #allocation1 [shape = 'u32[72,128]{1,0:T(1,128)}', space=vmem, size = 0x9000, scoped, tag = 'internal scratch']
  %s0 = inlined_call_operand.hbm [shape: bf16[16,128], index: 0, kind: input, shape index: {}]
  %s1 = inlined_call_operand.hbm [shape: bf16[128,128], index: 1, kind: input, shape index: {}]
  %s2 = inlined_call_operand.vmem [shape: f32[1,128], index: 2, kind: input, shape index: {}]
  %s3 = inlined_call_operand.hbm [shape: bf16[128,128], index: 3, kind: input, shape index: {}]
  %s4 = inlined_call_operand.vmem [shape: f32[1,128], index: 4, kind: input, shape index: {}]
  %s5 = inlined_call_operand.hbm [shape: bf16[256,128], index: 5, kind: input, shape index: {}]
  %s6 = inlined_call_operand.vmem [shape: f32[1,128], index: 6, kind: input, shape index: {}]
  %s7 = inlined_call_operand.hbm [shape: bf16[16,128], index: 7, kind: output, shape index: {}]
  %s8 = sld [smem:[#allocation0]]
  $region54: #{tpu_custom_call.1} parent=0
    _
  %s10 = ssub.s32 1, %s8
  %s11 = scalar_select 0, %s10, %s8
  $region1: #{tpu_custom_call.1} parent=0
    #allocation2 [shape = 'u8[4096]{0}', space=vmem, size = 0x1000, scoped, tag = 'input window, operand 0, single buffered']
    #allocation3 [shape = 's32[1]{0}', space=sflag, size = 0x4, scoped, tag = 'scoped memory for tpu_custom_call.1']
    #allocation4 [shape = 's32[1]{0}', space=sflag, size = 0x4, scoped, tag = 'scoped memory for tpu_custom_call.1']
    #allocation5 [shape = 'u8[32768]{0}', space=vmem, size = 0x8000, scoped, tag = 'input window, operand 1, single buffered']
    #allocation6 [shape = 's32[1]{0}', space=sflag, size = 0x4, scoped, tag = 'scoped memory for tpu_custom_call.1']
    #allocation7 [shape = 'u8[32768]{0}', space=vmem, size = 0x8000, scoped, tag = 'input window, operand 3, single buffered']
    #allocation8 [shape = 'u8[65536]{0}', space=vmem, size = 0x10000, scoped, tag = 'input window, operand 5, single buffered']
    #allocation9 [shape = 's32[1]{0}', space=sflag, size = 0x4, scoped, tag = 'scoped memory for tpu_custom_call.1']
    #allocation10 [shape = 'u8[4096]{0}', space=vmem, size = 0x1000, scoped, tag = 'output window, operand 0, single buffered']
    %12 = vsyncpa [#allocation3], 0
    %13 = vsyncpa [#allocation6], 0
    %14 = vsyncpa [#allocation9], 0
    %15 = vsyncpa [#allocation4], 0
    // Predicated region
    $region2: #{tpu_custom_call.1} parent=1 // pred_check
      _
    $region3: #{tpu_custom_call.1} parent=1 // pred_check_branch
      %17 = sbr.rel (0) target = $region5
    $region4: #{tpu_custom_call.1} parent=1 // pred_region
      %19 = vsyncadd [#allocation3], 0
      %s20 = sshll.u32 %s0, 4
      %s21 = int_to_ptr.hbm [resolvable:$true] %s20
      %s22 = sshll.u32 [#allocation2], 4
      %s23 = int_to_ptr.vmem [resolvable:$true] %s22
      %28 = dma.hbm_to_vmem [thread:$0]  %s21, 128, %s23, [#allocation3], 64, 64, 4
    $region5: #{tpu_custom_call.1} parent=1 // pred_fallthru
      _
    // Predicated region
    $region6: #{tpu_custom_call.1} parent=1 // pred_check
      _
    $region7: #{tpu_custom_call.1} parent=1 // pred_check_branch
      %30 = sbr.rel (0) target = $region9
    $region8: #{tpu_custom_call.1} parent=1 // pred_region
      %32 = vsyncadd [#allocation6], 0
      %s33 = sshll.u32 %s1, 4
      %s34 = int_to_ptr.hbm [resolvable:$true] %s33
      %s35 = sshll.u32 [#allocation5], 4
      %s36 = int_to_ptr.vmem [resolvable:$true] %s35
      %41 = dma.hbm_to_vmem [thread:$0]  %s34, 1024, %s36, [#allocation6], 64, 64, 4
    $region9: #{tpu_custom_call.1} parent=1 // pred_fallthru
      _
    // Predicated region
    $region10: #{tpu_custom_call.1} parent=1 // pred_check
      _
    $region11: #{tpu_custom_call.1} parent=1 // pred_check_branch
      %43 = sbr.rel (0) target = $region13
    $region12: #{tpu_custom_call.1} parent=1 // pred_region
      _
    $region13: #{tpu_custom_call.1} parent=1 // pred_fallthru
      _
    // Predicated region
    $region14: #{tpu_custom_call.1} parent=1 // pred_check
      _
    $region15: #{tpu_custom_call.1} parent=1 // pred_check_branch
      %45 = sbr.rel (0) target = $region17
    $region16: #{tpu_custom_call.1} parent=1 // pred_region
      %47 = vsyncadd [#allocation6], 0
      %s48 = sshll.u32 %s3, 4
      %s49 = int_to_ptr.hbm [resolvable:$true] %s48
      %s50 = sshll.u32 [#allocation7], 4
      %s51 = int_to_ptr.vmem [resolvable:$true] %s50
      %56 = dma.hbm_to_vmem [thread:$0]  %s49, 1024, %s51, [#allocation6], 64, 64, 4
    $region17: #{tpu_custom_call.1} parent=1 // pred_fallthru
      _
    // Predicated region
    $region18: #{tpu_custom_call.1} parent=1 // pred_check
      _
    $region19: #{tpu_custom_call.1} parent=1 // pred_check_branch
      %58 = sbr.rel (0) target = $region21
    $region20: #{tpu_custom_call.1} parent=1 // pred_region
      _
    $region21: #{tpu_custom_call.1} parent=1 // pred_fallthru
      _
    // Predicated region
    $region22: #{tpu_custom_call.1} parent=1 // pred_check
      _
    $region23: #{tpu_custom_call.1} parent=1 // pred_check_branch
      %60 = sbr.rel (0) target = $region25
    $region24: #{tpu_custom_call.1} parent=1 // pred_region
      %62 = vsyncadd [#allocation9], 0
      %s63 = sshll.u32 %s5, 4
      %s64 = int_to_ptr.hbm [resolvable:$true] %s63
      %s65 = sshll.u32 [#allocation8], 4
      %s66 = int_to_ptr.vmem [resolvable:$true] %s65
      %71 = dma.hbm_to_vmem [thread:$0]  %s64, 2048, %s66, [#allocation9], 64, 64, 4
    $region25: #{tpu_custom_call.1} parent=1 // pred_fallthru
      _
    // Predicated region
    $region26: #{tpu_custom_call.1} parent=1 // pred_check
      _
    $region27: #{tpu_custom_call.1} parent=1 // pred_check_branch
      %73 = sbr.rel (0) target = $region29
    $region28: #{tpu_custom_call.1} parent=1 // pred_region
      _
    $region29: #{tpu_custom_call.1} parent=1 // pred_fallthru
      _
    // Predicated region
    $region30: #{tpu_custom_call.1} parent=1 // pred_check
      _
    $region31: #{tpu_custom_call.1} parent=1 // pred_check_branch
      %75 = sbr.rel (0) target = $region33
    $region32: #{tpu_custom_call.1} parent=1 // pred_region
      %77 = dma.done [#allocation3], 128
    $region33: #{tpu_custom_call.1} parent=1 // pred_fallthru
      _
    // Predicated region
    $region34: #{tpu_custom_call.1} parent=1 // pred_check
      _
    $region35: #{tpu_custom_call.1} parent=1 // pred_check_branch
      %79 = sbr.rel (0) target = $region37
    $region36: #{tpu_custom_call.1} parent=1 // pred_region
      %81 = dma.done [#allocation6], 1024
    $region37: #{tpu_custom_call.1} parent=1 // pred_fallthru
      _
    // Predicated region
    $region38: #{tpu_custom_call.1} parent=1 // pred_check
      _
    $region39: #{tpu_custom_call.1} parent=1 // pred_check_branch
      %83 = sbr.rel (0) target = $region41
    $region40: #{tpu_custom_call.1} parent=1 // pred_region
      %85 = dma.done [#allocation6], 1024
    $region41: #{tpu_custom_call.1} parent=1 // pred_fallthru
      _
    // Predicated region
    $region42: #{tpu_custom_call.1} parent=1 // pred_check
      _
    $region43: #{tpu_custom_call.1} parent=1 // pred_check_branch
      %87 = sbr.rel (0) target = $region45
    $region44: #{tpu_custom_call.1} parent=1 // pred_region
      %89 = dma.done [#allocation9], 2048
    $region45: #{tpu_custom_call.1} parent=1 // pred_fallthru
      _
    %v90 = vld [vmem:[#allocation2] sm:$0xf]
    %v91 = vld [vmem:[#allocation2 + $0x4] sm:$0xf]
    %v92 = vld [vmem:[#allocation5] sm:$0xf]
    %v93 = vld [vmem:[#allocation5 + $0x4] sm:$0xf]
    %v94 = vld [vmem:[#allocation5 + $0x8] sm:$0xf]
    %v95 = vld [vmem:[#allocation5 + $0xc] sm:$0xf]
    %v96 = vld [vmem:[#allocation5 + $0x10] sm:$0xf]
    %v97 = vld [vmem:[#allocation5 + $0x14] sm:$0xf]
    %v98 = vld [vmem:[#allocation5 + $0x18] sm:$0xf]
    %v99 = vld [vmem:[#allocation5 + $0x1c] sm:$0xf]
    %v100 = vld [vmem:[#allocation5 + $0x20] sm:$0xf]
    %v101 = vld [vmem:[#allocation5 + $0x24] sm:$0xf]
    %v102 = vld [vmem:[#allocation5 + $0x28] sm:$0xf]
    %v103 = vld [vmem:[#allocation5 + $0x2c] sm:$0xf]
    %v104 = vld [vmem:[#allocation5 + $0x30] sm:$0xf]
    %v105 = vld [vmem:[#allocation5 + $0x34] sm:$0xf]
    %v106 = vld [vmem:[#allocation5 + $0x38] sm:$0xf]
    %v107 = vld [vmem:[#allocation5 + $0x3c] sm:$0xf]
    %v108 = vld [vmem:[%s2] sm:$0x1]
    %v110 = vperm.slane %v108, 0
    %v114 = vunpack.c.l.b16 %v90
    %v115 = vunpack.c.l.b16 %v91
    %v116 = vpack.c.b16 %v115, %v114
    %v134 = vunpack.c.l.b16 %v92
    %v135 = vunpack.c.l.b16 %v93
    %v136 = vunpack.c.l.b16 %v94
    %v137 = vunpack.c.l.b16 %v95
    %v138 = vunpack.c.l.b16 %v96
    %v139 = vunpack.c.l.b16 %v97
    %v140 = vunpack.c.l.b16 %v98
    %v141 = vunpack.c.l.b16 %v99
    %v142 = vunpack.c.l.b16 %v100
    %v143 = vunpack.c.l.b16 %v101
    %v144 = vunpack.c.l.b16 %v102
    %v145 = vunpack.c.l.b16 %v103
    %v146 = vunpack.c.l.b16 %v104
    %v147 = vunpack.c.l.b16 %v105
    %v148 = vunpack.c.l.b16 %v106
    %v149 = vunpack.c.l.b16 %v107
    %v150 = vpack.c.b16 %v135, %v134
    %v151 = vpack.c.b16 %v137, %v136
    %v152 = vpack.c.b16 %v139, %v138
    %v153 = vpack.c.b16 %v141, %v140
    %v154 = vpack.c.b16 %v143, %v142
    %v155 = vpack.c.b16 %v145, %v144
    %v156 = vpack.c.b16 %v147, %v146
    %v157 = vpack.c.b16 %v149, %v148
    %166 = vmatpush.bf16.msra.mxu0 %v157
    %167 = vmatpush.bf16.msra.mxu0 %v156
    %168 = vmatpush.bf16.msra.mxu0 %v155
    %169 = vmatpush.bf16.msra.mxu0 %v154
    %170 = vmatpush.bf16.msra.mxu0 %v153
    %171 = vmatpush.bf16.msra.mxu0 %v152
    %172 = vmatpush.bf16.msra.mxu0 %v151
    %173 = vmatpush.bf16.msra.mxu0 %v150
    %174 = vmatmul.bf16.gmra.mxu0 %v116
    %v175 = vpop.f32.mrf.mxu0
    %v176 = vadd.f32 %v110, %v175
    %v177 = vpop.f32.mrf.mxu0
    %v178 = vadd.f32 %v110, %v177
    %179 = vdwg.mxu0
    %v180 = vmax.f32 %v176, 0.0
    %v181 = vmax.f32 %v178, 0.0
    %v182 = vpack.c.bf16 %v181, %v180
    %v183 = vld [vmem:[#allocation7] sm:$0xf]
    %v184 = vld [vmem:[#allocation7 + $0x4] sm:$0xf]
    %v185 = vld [vmem:[#allocation7 + $0x8] sm:$0xf]
    %v186 = vld [vmem:[#allocation7 + $0xc] sm:$0xf]
    %v187 = vld [vmem:[#allocation7 + $0x10] sm:$0xf]
    %v188 = vld [vmem:[#allocation7 + $0x14] sm:$0xf]
    %v189 = vld [vmem:[#allocation7 + $0x18] sm:$0xf]
    %v190 = vld [vmem:[#allocation7 + $0x1c] sm:$0xf]
    %v191 = vld [vmem:[#allocation7 + $0x20] sm:$0xf]
    %v192 = vld [vmem:[#allocation7 + $0x24] sm:$0xf]
    %v193 = vld [vmem:[#allocation7 + $0x28] sm:$0xf]
    %v194 = vld [vmem:[#allocation7 + $0x2c] sm:$0xf]
    %v195 = vld [vmem:[#allocation7 + $0x30] sm:$0xf]
    %v196 = vld [vmem:[#allocation7 + $0x34] sm:$0xf]
    %v197 = vld [vmem:[#allocation7 + $0x38] sm:$0xf]
    %v198 = vld [vmem:[#allocation7 + $0x3c] sm:$0xf]
    %v199 = vld [vmem:[%s4] sm:$0x1]
    %v201 = vperm.slane %v199, 0
    %v219 = vunpack.c.l.b16 %v183
    %v220 = vunpack.c.l.b16 %v184
    %v221 = vunpack.c.l.b16 %v185
    %v222 = vunpack.c.l.b16 %v186
    %v223 = vunpack.c.l.b16 %v187
    %v224 = vunpack.c.l.b16 %v188
    %v225 = vunpack.c.l.b16 %v189
    %v226 = vunpack.c.l.b16 %v190
    %v227 = vunpack.c.l.b16 %v191
    %v228 = vunpack.c.l.b16 %v192
    %v229 = vunpack.c.l.b16 %v193
    %v230 = vunpack.c.l.b16 %v194
    %v231 = vunpack.c.l.b16 %v195
    %v232 = vunpack.c.l.b16 %v196
    %v233 = vunpack.c.l.b16 %v197
    %v234 = vunpack.c.l.b16 %v198
    %v235 = vpack.c.b16 %v220, %v219
    %v236 = vpack.c.b16 %v222, %v221
    %v237 = vpack.c.b16 %v224, %v223
    %v238 = vpack.c.b16 %v226, %v225
    %v239 = vpack.c.b16 %v228, %v227
    %v240 = vpack.c.b16 %v230, %v229
    %v241 = vpack.c.b16 %v232, %v231
    %v242 = vpack.c.b16 %v234, %v233
    %251 = vmatpush.bf16.msra.mxu0 %v242
    %252 = vmatpush.bf16.msra.mxu0 %v241
    %253 = vmatpush.bf16.msra.mxu0 %v240
    %254 = vmatpush.bf16.msra.mxu0 %v239
    %255 = vmatpush.bf16.msra.mxu0 %v238
    %256 = vmatpush.bf16.msra.mxu0 %v237
    %257 = vmatpush.bf16.msra.mxu0 %v236
    %258 = vmatpush.bf16.msra.mxu0 %v235
    %259 = vmatmul.bf16.gmra.mxu0 %v182
    %v260 = vpop.f32.mrf.mxu0
    %v261 = vadd.f32 %v201, %v260
    %v262 = vpop.f32.mrf.mxu0
    %v263 = vadd.f32 %v201, %v262
    %264 = vdwg.mxu0
    %v265 = vmax.f32 %v261, 0.0
    %v266 = vmax.f32 %v263, 0.0
    %v267 = vpack.c.bf16 %v265, %v265
    %v268 = vpack.c.bf16 %v266, %v266
    %v271 = vunpack.c.l.b16 %v267
    %v272 = vunpack.c.l.b16 %v268
    %v273 = vpack.c.b16 %v272, %v271
    %v275 = vld [vmem:[#allocation8] sm:$0xf]
    %v276 = vld [vmem:[#allocation8 + $0x4] sm:$0xf]
    %v277 = vld [vmem:[#allocation8 + $0x8] sm:$0xf]
    %v278 = vld [vmem:[#allocation8 + $0xc] sm:$0xf]
    %v279 = vld [vmem:[#allocation8 + $0x10] sm:$0xf]
    %v280 = vld [vmem:[#allocation8 + $0x14] sm:$0xf]
    %v281 = vld [vmem:[#allocation8 + $0x18] sm:$0xf]
    %v282 = vld [vmem:[#allocation8 + $0x1c] sm:$0xf]
    %v283 = vld [vmem:[#allocation8 + $0x20] sm:$0xf]
    %v284 = vld [vmem:[#allocation8 + $0x24] sm:$0xf]
    %v285 = vld [vmem:[#allocation8 + $0x28] sm:$0xf]
    %v286 = vld [vmem:[#allocation8 + $0x2c] sm:$0xf]
    %v287 = vld [vmem:[#allocation8 + $0x30] sm:$0xf]
    %v288 = vld [vmem:[#allocation8 + $0x34] sm:$0xf]
    %v289 = vld [vmem:[#allocation8 + $0x38] sm:$0xf]
    %v290 = vld [vmem:[#allocation8 + $0x3c] sm:$0xf]
    %v291 = vld [vmem:[#allocation8 + $0x40] sm:$0xf]
    %v292 = vld [vmem:[#allocation8 + $0x44] sm:$0xf]
    %v293 = vld [vmem:[#allocation8 + $0x48] sm:$0xf]
    %v294 = vld [vmem:[#allocation8 + $0x4c] sm:$0xf]
    %v295 = vld [vmem:[#allocation8 + $0x50] sm:$0xf]
    %v296 = vld [vmem:[#allocation8 + $0x54] sm:$0xf]
    %v297 = vld [vmem:[#allocation8 + $0x58] sm:$0xf]
    %v298 = vld [vmem:[#allocation8 + $0x5c] sm:$0xf]
    %v299 = vld [vmem:[#allocation8 + $0x60] sm:$0xf]
    %v300 = vld [vmem:[#allocation8 + $0x64] sm:$0xf]
    %v301 = vld [vmem:[#allocation8 + $0x68] sm:$0xf]
    %v302 = vld [vmem:[#allocation8 + $0x6c] sm:$0xf]
    %v303 = vld [vmem:[#allocation8 + $0x70] sm:$0xf]
    %v304 = vld [vmem:[#allocation8 + $0x74] sm:$0xf]
    %v305 = vld [vmem:[#allocation8 + $0x78] sm:$0xf]
    %v306 = vld [vmem:[#allocation8 + $0x7c] sm:$0xf]
    %v307 = vld [vmem:[%s6] sm:$0x1]
    %v309 = vperm.slane %v307, 0
    %v343 = vunpack.c.l.b16 %v275
    %v344 = vunpack.c.l.b16 %v276
    %v345 = vunpack.c.l.b16 %v277
    %v346 = vunpack.c.l.b16 %v278
    %v347 = vunpack.c.l.b16 %v279
    %v348 = vunpack.c.l.b16 %v280
    %v349 = vunpack.c.l.b16 %v281
    %v350 = vunpack.c.l.b16 %v282
    %v351 = vunpack.c.l.b16 %v283
    %v352 = vunpack.c.l.b16 %v284
    %v353 = vunpack.c.l.b16 %v285
    %v354 = vunpack.c.l.b16 %v286
    %v355 = vunpack.c.l.b16 %v287
    %v356 = vunpack.c.l.b16 %v288
    %v357 = vunpack.c.l.b16 %v289
    %v358 = vunpack.c.l.b16 %v290
    %v359 = vunpack.c.l.b16 %v291
    %v360 = vunpack.c.l.b16 %v292
    %v361 = vunpack.c.l.b16 %v293
    %v362 = vunpack.c.l.b16 %v294
    %v363 = vunpack.c.l.b16 %v295
    %v364 = vunpack.c.l.b16 %v296
    %v365 = vunpack.c.l.b16 %v297
    %v366 = vunpack.c.l.b16 %v298
    %v367 = vunpack.c.l.b16 %v299
    %v368 = vunpack.c.l.b16 %v300
    %v369 = vunpack.c.l.b16 %v301
    %v370 = vunpack.c.l.b16 %v302
    %v371 = vunpack.c.l.b16 %v303
    %v372 = vunpack.c.l.b16 %v304
    %v373 = vunpack.c.l.b16 %v305
    %v374 = vunpack.c.l.b16 %v306
    %v375 = vpack.c.b16 %v344, %v343
    %v376 = vpack.c.b16 %v346, %v345
    %v377 = vpack.c.b16 %v348, %v347
    %v378 = vpack.c.b16 %v350, %v349
    %v379 = vpack.c.b16 %v352, %v351
    %v380 = vpack.c.b16 %v354, %v353
    %v381 = vpack.c.b16 %v356, %v355
    %v382 = vpack.c.b16 %v358, %v357
    %v383 = vpack.c.b16 %v360, %v359
    %v384 = vpack.c.b16 %v362, %v361
    %v385 = vpack.c.b16 %v364, %v363
    %v386 = vpack.c.b16 %v366, %v365
    %v387 = vpack.c.b16 %v368, %v367
    %v388 = vpack.c.b16 %v370, %v369
    %v389 = vpack.c.b16 %v372, %v371
    %v390 = vpack.c.b16 %v374, %v373
    %407 = vmatpush.bf16.msra.mxu0 %v382
    %408 = vmatpush.bf16.msra.mxu0 %v381
    %409 = vmatpush.bf16.msra.mxu0 %v380
    %410 = vmatpush.bf16.msra.mxu0 %v379
    %411 = vmatpush.bf16.msra.mxu0 %v378
    %412 = vmatpush.bf16.msra.mxu0 %v377
    %413 = vmatpush.bf16.msra.mxu0 %v376
    %414 = vmatpush.bf16.msra.mxu0 %v375
    %415 = vmatmul.bf16.gmra.mxu0 %v273
    %v416 = vpop.f32.mrf.mxu0
    %v417 = vadd.f32 %v309, %v416
    %v418 = vpop.f32.mrf.mxu0
    %v419 = vadd.f32 %v309, %v418
    %420 = vdwg.mxu0
    %421 = vmatpush.bf16.msra.mxu0 %v390
    %422 = vmatpush.bf16.msra.mxu0 %v389
    %423 = vmatpush.bf16.msra.mxu0 %v388
    %424 = vmatpush.bf16.msra.mxu0 %v387
    %425 = vmatpush.bf16.msra.mxu0 %v386
    %426 = vmatpush.bf16.msra.mxu0 %v385
    %427 = vmatpush.bf16.msra.mxu0 %v384
    %428 = vmatpush.bf16.msra.mxu0 %v383
    %429 = vmatmul.bf16.gmra.mxu0 %v116
    %v430 = vpop.f32.mrf.mxu0
    %v431 = vadd.f32 %v417, %v430
    %v432 = vpop.f32.mrf.mxu0
    %v433 = vadd.f32 %v419, %v432
    %434 = vdwg.mxu0
    %v435 = vmax.f32 %v431, 0.0
    %v436 = vmax.f32 %v433, 0.0
    %v437 = vpack.c.bf16 %v435, %v435
    %v438 = vpack.c.bf16 %v436, %v436
    %439 = vst [vmem:[#allocation10] sm:$0xf] %v437
    %440 = vst [vmem:[#allocation10 + $0x4] sm:$0xf] %v438
    // Predicated region
    $region46: #{tpu_custom_call.1} parent=1 // pred_check
      _
    $region47: #{tpu_custom_call.1} parent=1 // pred_check_branch
      %442 = sbr.rel (0) target = $region49
    $region48: #{tpu_custom_call.1} parent=1 // pred_region
      %444 = vsyncadd [#allocation4], 0
      %s445 = sshll.u32 [#allocation10], 4
      %s446 = int_to_ptr.vmem [resolvable:$true] %s445
      %s447 = sshll.u32 %s7, 4
      %s448 = int_to_ptr.hbm [resolvable:$true] %s447
      %453 = dma.vmem_to_hbm [thread:$0]  %s446, 128, %s448, [#allocation4], 64, 64, 4
    $region49: #{tpu_custom_call.1} parent=1 // pred_fallthru
      _
    // Predicated region
    $region50: #{tpu_custom_call.1} parent=1 // pred_check
      _
    $region51: #{tpu_custom_call.1} parent=1 // pred_check_branch
      %455 = sbr.rel (0) target = $region53
    $region52: #{tpu_custom_call.1} parent=1 // pred_region
      %457 = dma.done [#allocation4], 128
    $region53: #{tpu_custom_call.1} parent=1 // pred_fallthru
      _
    %458 = vsyncpa [#allocation3], 1
    %459 = vsyncpa [#allocation6], 1
    %460 = vsyncpa [#allocation9], 1
    %461 = vsyncpa [#allocation4], 1

// kernel: tpu_custom_call.1
$region0: #{tpu_custom_call.1}
  #allocation0 [shape = 'u32[]', space=smem, size = 0x4, offset = 0x4, fixed_abs, tag = 'smem constant byte address 0x4 - core index']
  #allocation1 [shape = 'u32[72,128]{1,0:T(1,128)}', space=vmem, size = 0x9000, scoped, tag = 'internal scratch']
  %s0 = inlined_call_operand.hbm [shape: bf16[16,128], index: 0, kind: input, shape index: {}]
  %s1 = inlined_call_operand.hbm [shape: bf16[128,128], index: 1, kind: input, shape index: {}]
  %s2 = inlined_call_operand.vmem [shape: f32[1,128], index: 2, kind: input, shape index: {}]
  %s3 = inlined_call_operand.hbm [shape: bf16[128,128], index: 3, kind: input, shape index: {}]
  %s4 = inlined_call_operand.vmem [shape: f32[1,128], index: 4, kind: input, shape index: {}]
  %s5 = inlined_call_operand.hbm [shape: bf16[256,128], index: 5, kind: input, shape index: {}]
  %s6 = inlined_call_operand.vmem [shape: f32[1,128], index: 6, kind: input, shape index: {}]
  %s7 = inlined_call_operand.hbm [shape: bf16[16,128], index: 7, kind: output, shape index: {}]
  %s8 = sld [smem:[#allocation0]]
  $region54: #{tpu_custom_call.1} parent=0
    _
  %s10 = ssub.s32 1, %s8
  %s11 = scalar_select 0, %s10, %s8
  $region1: #{tpu_custom_call.1} parent=0
    #allocation2 [shape = 'u8[4096]{0}', space=vmem, size = 0x1000, scoped, tag = 'input window, operand 0, single buffered']
    #allocation3 [shape = 's32[1]{0}', space=sflag, size = 0x4, scoped, tag = 'scoped memory for tpu_custom_call.1']
    #allocation4 [shape = 's32[1]{0}', space=sflag, size = 0x4, scoped, tag = 'scoped memory for tpu_custom_call.1']
    #allocation5 [shape = 'u8[32768]{0}', space=vmem, size = 0x8000, scoped, tag = 'input window, operand 1, single buffered']
    #allocation6 [shape = 's32[1]{0}', space=sflag, size = 0x4, scoped, tag = 'scoped memory for tpu_custom_call.1']
    #allocation7 [shape = 'u8[32768]{0}', space=vmem, size = 0x8000, scoped, tag = 'input window, operand 3, single buffered']
    #allocation8 [shape = 'u8[65536]{0}', space=vmem, size = 0x10000, scoped, tag = 'input window, operand 5, single buffered']
    #allocation9 [shape = 's32[1]{0}', space=sflag, size = 0x4, scoped, tag = 'scoped memory for tpu_custom_call.1']
    #allocation10 [shape = 'u8[4096]{0}', space=vmem, size = 0x1000, scoped, tag = 'output window, operand 0, single buffered']
    %12 = vsyncpa [#allocation3], 0
    %13 = vsyncpa [#allocation6], 0
    %14 = vsyncpa [#allocation9], 0
    %15 = vsyncpa [#allocation4], 0
    // Predicated region
    $region2: #{tpu_custom_call.1} parent=1 // pred_check
      _
    $region3: #{tpu_custom_call.1} parent=1 // pred_check_branch
      %17 = sbr.rel (0) target = $region5
    $region4: #{tpu_custom_call.1} parent=1 // pred_region
      %19 = vsyncadd [#allocation3], 0
      %s20 = sshll.u32 %s0, 4
      %s21 = int_to_ptr.hbm [resolvable:$true] %s20
      %s22 = sshll.u32 [#allocation2], 4
      %s23 = int_to_ptr.vmem [resolvable:$true] %s22
      %28 = dma.hbm_to_vmem [thread:$0]  %s21, 128, %s23, [#allocation3], 64, 64, 4
    $region5: #{tpu_custom_call.1} parent=1 // pred_fallthru
      _
    // Predicated region
    $region6: #{tpu_custom_call.1} parent=1 // pred_check
      _
    $region7: #{tpu_custom_call.1} parent=1 // pred_check_branch
      %30 = sbr.rel (0) target = $region9
    $region8: #{tpu_custom_call.1} parent=1 // pred_region
      %32 = vsyncadd [#allocation6], 0
      %s33 = sshll.u32 %s1, 4
      %s34 = int_to_ptr.hbm [resolvable:$true] %s33
      %s35 = sshll.u32 [#allocation5], 4
      %s36 = int_to_ptr.vmem [resolvable:$true] %s35
      %41 = dma.hbm_to_vmem [thread:$0]  %s34, 1024, %s36, [#allocation6], 64, 64, 4
    $region9: #{tpu_custom_call.1} parent=1 // pred_fallthru
      _
    // Predicated region
    $region10: #{tpu_custom_call.1} parent=1 // pred_check
      _
    $region11: #{tpu_custom_call.1} parent=1 // pred_check_branch
      %43 = sbr.rel (0) target = $region13
    $region12: #{tpu_custom_call.1} parent=1 // pred_region
      _
    $region13: #{tpu_custom_call.1} parent=1 // pred_fallthru
      _
    // Predicated region
    $region14: #{tpu_custom_call.1} parent=1 // pred_check
      _
    $region15: #{tpu_custom_call.1} parent=1 // pred_check_branch
      %45 = sbr.rel (0) target = $region17
    $region16: #{tpu_custom_call.1} parent=1 // pred_region
      %47 = vsyncadd [#allocation6], 0
      %s48 = sshll.u32 %s3, 4
      %s49 = int_to_ptr.hbm [resolvable:$true] %s48
      %s50 = sshll.u32 [#allocation7], 4
      %s51 = int_to_ptr.vmem [resolvable:$true] %s50
      %56 = dma.hbm_to_vmem [thread:$0]  %s49, 1024, %s51, [#allocation6], 64, 64, 4
    $region17: #{tpu_custom_call.1} parent=1 // pred_fallthru
      _
    // Predicated region
    $region18: #{tpu_custom_call.1} parent=1 // pred_check
      _
    $region19: #{tpu_custom_call.1} parent=1 // pred_check_branch
      %58 = sbr.rel (0) target = $region21
    $region20: #{tpu_custom_call.1} parent=1 // pred_region
      _
    $region21: #{tpu_custom_call.1} parent=1 // pred_fallthru
      _
    // Predicated region
    $region22: #{tpu_custom_call.1} parent=1 // pred_check
      _
    $region23: #{tpu_custom_call.1} parent=1 // pred_check_branch
      %60 = sbr.rel (0) target = $region25
    $region24: #{tpu_custom_call.1} parent=1 // pred_region
      %62 = vsyncadd [#allocation9], 0
      %s63 = sshll.u32 %s5, 4
      %s64 = int_to_ptr.hbm [resolvable:$true] %s63
      %s65 = sshll.u32 [#allocation8], 4
      %s66 = int_to_ptr.vmem [resolvable:$true] %s65
      %71 = dma.hbm_to_vmem [thread:$0]  %s64, 2048, %s66, [#allocation9], 64, 64, 4
    $region25: #{tpu_custom_call.1} parent=1 // pred_fallthru
      _
    // Predicated region
    $region26: #{tpu_custom_call.1} parent=1 // pred_check
      _
    $region27: #{tpu_custom_call.1} parent=1 // pred_check_branch
      %73 = sbr.rel (0) target = $region29
    $region28: #{tpu_custom_call.1} parent=1 // pred_region
      _
    $region29: #{tpu_custom_call.1} parent=1 // pred_fallthru
      _
    // Predicated region
    $region30: #{tpu_custom_call.1} parent=1 // pred_check
      _
    $region31: #{tpu_custom_call.1} parent=1 // pred_check_branch
      %75 = sbr.rel (0) target = $region33
    $region32: #{tpu_custom_call.1} parent=1 // pred_region
      %77 = dma.done [#allocation3], 128
    $region33: #{tpu_custom_call.1} parent=1 // pred_fallthru
      _
    // Predicated region
    $region34: #{tpu_custom_call.1} parent=1 // pred_check
      _
    $region35: #{tpu_custom_call.1} parent=1 // pred_check_branch
      %79 = sbr.rel (0) target = $region37
    $region36: #{tpu_custom_call.1} parent=1 // pred_region
      %81 = dma.done [#allocation6], 1024
    $region37: #{tpu_custom_call.1} parent=1 // pred_fallthru
      _
    // Predicated region
    $region38: #{tpu_custom_call.1} parent=1 // pred_check
      _
    $region39: #{tpu_custom_call.1} parent=1 // pred_check_branch
      %83 = sbr.rel (0) target = $region41
    $region40: #{tpu_custom_call.1} parent=1 // pred_region
      %85 = dma.done [#allocation6], 1024
    $region41: #{tpu_custom_call.1} parent=1 // pred_fallthru
      _
    // Predicated region
    $region42: #{tpu_custom_call.1} parent=1 // pred_check
      _
    $region43: #{tpu_custom_call.1} parent=1 // pred_check_branch
      %87 = sbr.rel (0) target = $region45
    $region44: #{tpu_custom_call.1} parent=1 // pred_region
      %89 = dma.done [#allocation9], 2048
    $region45: #{tpu_custom_call.1} parent=1 // pred_fallthru
      _
    %v90 = vld [vmem:[#allocation2] sm:$0xf]
    %v91 = vld [vmem:[#allocation2 + $0x4] sm:$0xf]
    %v92 = vld [vmem:[#allocation5] sm:$0xf]
    %v93 = vld [vmem:[#allocation5 + $0x4] sm:$0xf]
    %v94 = vld [vmem:[#allocation5 + $0x8] sm:$0xf]
    %v95 = vld [vmem:[#allocation5 + $0xc] sm:$0xf]
    %v96 = vld [vmem:[#allocation5 + $0x10] sm:$0xf]
    %v97 = vld [vmem:[#allocation5 + $0x14] sm:$0xf]
    %v98 = vld [vmem:[#allocation5 + $0x18] sm:$0xf]
    %v99 = vld [vmem:[#allocation5 + $0x1c] sm:$0xf]
    %v100 = vld [vmem:[#allocation5 + $0x20] sm:$0xf]
    %v101 = vld [vmem:[#allocation5 + $0x24] sm:$0xf]
    %v102 = vld [vmem:[#allocation5 + $0x28] sm:$0xf]
    %v103 = vld [vmem:[#allocation5 + $0x2c] sm:$0xf]
    %v104 = vld [vmem:[#allocation5 + $0x30] sm:$0xf]
    %v105 = vld [vmem:[#allocation5 + $0x34] sm:$0xf]
    %v106 = vld [vmem:[#allocation5 + $0x38] sm:$0xf]
    %v107 = vld [vmem:[#allocation5 + $0x3c] sm:$0xf]
    %v108 = vld [vmem:[%s2] sm:$0x1]
    %v110 = vperm.slane %v108, 0
    %v114 = vunpack.c.l.b16 %v90
    %v115 = vunpack.c.l.b16 %v91
    %v116 = vpack.c.b16 %v115, %v114
    %v134 = vunpack.c.l.b16 %v92
    %v135 = vunpack.c.l.b16 %v93
    %v136 = vunpack.c.l.b16 %v94
    %v137 = vunpack.c.l.b16 %v95
    %v138 = vunpack.c.l.b16 %v96
    %v139 = vunpack.c.l.b16 %v97
    %v140 = vunpack.c.l.b16 %v98
    %v141 = vunpack.c.l.b16 %v99
    %v142 = vunpack.c.l.b16 %v100
    %v143 = vunpack.c.l.b16 %v101
    %v144 = vunpack.c.l.b16 %v102
    %v145 = vunpack.c.l.b16 %v103
    %v146 = vunpack.c.l.b16 %v104
    %v147 = vunpack.c.l.b16 %v105
    %v148 = vunpack.c.l.b16 %v106
    %v149 = vunpack.c.l.b16 %v107
    %v150 = vpack.c.b16 %v135, %v134
    %v151 = vpack.c.b16 %v137, %v136
    %v152 = vpack.c.b16 %v139, %v138
    %v153 = vpack.c.b16 %v141, %v140
    %v154 = vpack.c.b16 %v143, %v142
    %v155 = vpack.c.b16 %v145, %v144
    %v156 = vpack.c.b16 %v147, %v146
    %v157 = vpack.c.b16 %v149, %v148
    %166 = vmatpush.bf16.msra.mxu0 %v157
    %167 = vmatpush.bf16.msra.mxu0 %v156
    %168 = vmatpush.bf16.msra.mxu0 %v155
    %169 = vmatpush.bf16.msra.mxu0 %v154
    %170 = vmatpush.bf16.msra.mxu0 %v153
    %171 = vmatpush.bf16.msra.mxu0 %v152
    %172 = vmatpush.bf16.msra.mxu0 %v151
    %173 = vmatpush.bf16.msra.mxu0 %v150
    %174 = vmatmul.bf16.gmra.mxu0 %v116
    %v175 = vpop.f32.mrf.mxu0
    %v176 = vadd.f32 %v110, %v175
    %v177 = vpop.f32.mrf.mxu0
    %v178 = vadd.f32 %v110, %v177
    %179 = vdwg.mxu0
    %v180 = vmax.f32 %v176, 0.0
    %v181 = vmax.f32 %v178, 0.0
    %v182 = vpack.c.bf16 %v181, %v180
    %v183 = vld [vmem:[#allocation7] sm:$0xf]
    %v184 = vld [vmem:[#allocation7 + $0x4] sm:$0xf]
    %v185 = vld [vmem:[#allocation7 + $0x8] sm:$0xf]
    %v186 = vld [vmem:[#allocation7 + $0xc] sm:$0xf]
    %v187 = vld [vmem:[#allocation7 + $0x10] sm:$0xf]
    %v188 = vld [vmem:[#allocation7 + $0x14] sm:$0xf]
    %v189 = vld [vmem:[#allocation7 + $0x18] sm:$0xf]
    %v190 = vld [vmem:[#allocation7 + $0x1c] sm:$0xf]
    %v191 = vld [vmem:[#allocation7 + $0x20] sm:$0xf]
    %v192 = vld [vmem:[#allocation7 + $0x24] sm:$0xf]
    %v193 = vld [vmem:[#allocation7 + $0x28] sm:$0xf]
    %v194 = vld [vmem:[#allocation7 + $0x2c] sm:$0xf]
    %v195 = vld [vmem:[#allocation7 + $0x30] sm:$0xf]
    %v196 = vld [vmem:[#allocation7 + $0x34] sm:$0xf]
    %v197 = vld [vmem:[#allocation7 + $0x38] sm:$0xf]
    %v198 = vld [vmem:[#allocation7 + $0x3c] sm:$0xf]
    %v199 = vld [vmem:[%s4] sm:$0x1]
    %v201 = vperm.slane %v199, 0
    %v219 = vunpack.c.l.b16 %v183
    %v220 = vunpack.c.l.b16 %v184
    %v221 = vunpack.c.l.b16 %v185
    %v222 = vunpack.c.l.b16 %v186
    %v223 = vunpack.c.l.b16 %v187
    %v224 = vunpack.c.l.b16 %v188
    %v225 = vunpack.c.l.b16 %v189
    %v226 = vunpack.c.l.b16 %v190
    %v227 = vunpack.c.l.b16 %v191
    %v228 = vunpack.c.l.b16 %v192
    %v229 = vunpack.c.l.b16 %v193
    %v230 = vunpack.c.l.b16 %v194
    %v231 = vunpack.c.l.b16 %v195
    %v232 = vunpack.c.l.b16 %v196
    %v233 = vunpack.c.l.b16 %v197
    %v234 = vunpack.c.l.b16 %v198
    %v235 = vpack.c.b16 %v220, %v219
    %v236 = vpack.c.b16 %v222, %v221
    %v237 = vpack.c.b16 %v224, %v223
    %v238 = vpack.c.b16 %v226, %v225
    %v239 = vpack.c.b16 %v228, %v227
    %v240 = vpack.c.b16 %v230, %v229
    %v241 = vpack.c.b16 %v232, %v231
    %v242 = vpack.c.b16 %v234, %v233
    %251 = vmatpush.bf16.msra.mxu0 %v242
    %252 = vmatpush.bf16.msra.mxu0 %v241
    %253 = vmatpush.bf16.msra.mxu0 %v240
    %254 = vmatpush.bf16.msra.mxu0 %v239
    %255 = vmatpush.bf16.msra.mxu0 %v238
    %256 = vmatpush.bf16.msra.mxu0 %v237
    %257 = vmatpush.bf16.msra.mxu0 %v236
    %258 = vmatpush.bf16.msra.mxu0 %v235
    %259 = vmatmul.bf16.gmra.mxu0 %v182
    %v260 = vpop.f32.mrf.mxu0
    %v261 = vadd.f32 %v201, %v260
    %v262 = vpop.f32.mrf.mxu0
    %v263 = vadd.f32 %v201, %v262
    %264 = vdwg.mxu0
    %v265 = vmax.f32 %v261, 0.0
    %v266 = vmax.f32 %v263, 0.0
    %v267 = vpack.c.bf16 %v265, %v265
    %v268 = vpack.c.bf16 %v266, %v266
    %v271 = vunpack.c.l.b16 %v267
    %v272 = vunpack.c.l.b16 %v268
    %v273 = vpack.c.b16 %v272, %v271
    %v275 = vld [vmem:[#allocation8] sm:$0xf]
    %v276 = vld [vmem:[#allocation8 + $0x4] sm:$0xf]
    %v277 = vld [vmem:[#allocation8 + $0x8] sm:$0xf]
    %v278 = vld [vmem:[#allocation8 + $0xc] sm:$0xf]
    %v279 = vld [vmem:[#allocation8 + $0x10] sm:$0xf]
    %v280 = vld [vmem:[#allocation8 + $0x14] sm:$0xf]
    %v281 = vld [vmem:[#allocation8 + $0x18] sm:$0xf]
    %v282 = vld [vmem:[#allocation8 + $0x1c] sm:$0xf]
    %v283 = vld [vmem:[#allocation8 + $0x20] sm:$0xf]
    %v284 = vld [vmem:[#allocation8 + $0x24] sm:$0xf]
    %v285 = vld [vmem:[#allocation8 + $0x28] sm:$0xf]
    %v286 = vld [vmem:[#allocation8 + $0x2c] sm:$0xf]
    %v287 = vld [vmem:[#allocation8 + $0x30] sm:$0xf]
    %v288 = vld [vmem:[#allocation8 + $0x34] sm:$0xf]
    %v289 = vld [vmem:[#allocation8 + $0x38] sm:$0xf]
    %v290 = vld [vmem:[#allocation8 + $0x3c] sm:$0xf]
    %v291 = vld [vmem:[#allocation8 + $0x40] sm:$0xf]
    %v292 = vld [vmem:[#allocation8 + $0x44] sm:$0xf]
    %v293 = vld [vmem:[#allocation8 + $0x48] sm:$0xf]
    %v294 = vld [vmem:[#allocation8 + $0x4c] sm:$0xf]
    %v295 = vld [vmem:[#allocation8 + $0x50] sm:$0xf]
    %v296 = vld [vmem:[#allocation8 + $0x54] sm:$0xf]
    %v297 = vld [vmem:[#allocation8 + $0x58] sm:$0xf]
    %v298 = vld [vmem:[#allocation8 + $0x5c] sm:$0xf]
    %v299 = vld [vmem:[#allocation8 + $0x60] sm:$0xf]
    %v300 = vld [vmem:[#allocation8 + $0x64] sm:$0xf]
    %v301 = vld [vmem:[#allocation8 + $0x68] sm:$0xf]
    %v302 = vld [vmem:[#allocation8 + $0x6c] sm:$0xf]
    %v303 = vld [vmem:[#allocation8 + $0x70] sm:$0xf]
    %v304 = vld [vmem:[#allocation8 + $0x74] sm:$0xf]
    %v305 = vld [vmem:[#allocation8 + $0x78] sm:$0xf]
    %v306 = vld [vmem:[#allocation8 + $0x7c] sm:$0xf]
    %v307 = vld [vmem:[%s6] sm:$0x1]
    %v309 = vperm.slane %v307, 0
    %v343 = vunpack.c.l.b16 %v275
    %v344 = vunpack.c.l.b16 %v276
    %v345 = vunpack.c.l.b16 %v277
    %v346 = vunpack.c.l.b16 %v278
    %v347 = vunpack.c.l.b16 %v279
    %v348 = vunpack.c.l.b16 %v280
    %v349 = vunpack.c.l.b16 %v281
    %v350 = vunpack.c.l.b16 %v282
    %v351 = vunpack.c.l.b16 %v283
    %v352 = vunpack.c.l.b16 %v284
    %v353 = vunpack.c.l.b16 %v285
    %v354 = vunpack.c.l.b16 %v286
    %v355 = vunpack.c.l.b16 %v287
    %v356 = vunpack.c.l.b16 %v288
    %v357 = vunpack.c.l.b16 %v289
    %v358 = vunpack.c.l.b16 %v290
    %v359 = vunpack.c.l.b16 %v291
    %v360 = vunpack.c.l.b16 %v292
    %v361 = vunpack.c.l.b16 %v293
    %v362 = vunpack.c.l.b16 %v294
    %v363 = vunpack.c.l.b16 %v295
    %v364 = vunpack.c.l.b16 %v296
    %v365 = vunpack.c.l.b16 %v297
    %v366 = vunpack.c.l.b16 %v298
    %v367 = vunpack.c.l.b16 %v299
    %v368 = vunpack.c.l.b16 %v300
    %v369 = vunpack.c.l.b16 %v301
    %v370 = vunpack.c.l.b16 %v302
    %v371 = vunpack.c.l.b16 %v303
    %v372 = vunpack.c.l.b16 %v304
    %v373 = vunpack.c.l.b16 %v305
    %v374 = vunpack.c.l.b16 %v306
    %v375 = vpack.c.b16 %v344, %v343
    %v376 = vpack.c.b16 %v346, %v345
    %v377 = vpack.c.b16 %v348, %v347
    %v378 = vpack.c.b16 %v350, %v349
    %v379 = vpack.c.b16 %v352, %v351
    %v380 = vpack.c.b16 %v354, %v353
    %v381 = vpack.c.b16 %v356, %v355
    %v382 = vpack.c.b16 %v358, %v357
    %v383 = vpack.c.b16 %v360, %v359
    %v384 = vpack.c.b16 %v362, %v361
    %v385 = vpack.c.b16 %v364, %v363
    %v386 = vpack.c.b16 %v366, %v365
    %v387 = vpack.c.b16 %v368, %v367
    %v388 = vpack.c.b16 %v370, %v369
    %v389 = vpack.c.b16 %v372, %v371
    %v390 = vpack.c.b16 %v374, %v373
    %407 = vmatpush.bf16.msra.mxu0 %v382
    %408 = vmatpush.bf16.msra.mxu0 %v381
    %409 = vmatpush.bf16.msra.mxu0 %v380
    %410 = vmatpush.bf16.msra.mxu0 %v379
    %411 = vmatpush.bf16.msra.mxu0 %v378
    %412 = vmatpush.bf16.msra.mxu0 %v377
    %413 = vmatpush.bf16.msra.mxu0 %v376
    %414 = vmatpush.bf16.msra.mxu0 %v375
    %415 = vmatmul.bf16.gmra.mxu0 %v273
    %v416 = vpop.f32.mrf.mxu0
    %v417 = vadd.f32 %v309, %v416
    %v418 = vpop.f32.mrf.mxu0
    %v419 = vadd.f32 %v309, %v418
    %420 = vdwg.mxu0
    %421 = vmatpush.bf16.msra.mxu0 %v390
    %422 = vmatpush.bf16.msra.mxu0 %v389
    %423 = vmatpush.bf16.msra.mxu0 %v388
    %424 = vmatpush.bf16.msra.mxu0 %v387
    %425 = vmatpush.bf16.msra.mxu0 %v386
    %426 = vmatpush.bf16.msra.mxu0 %v385
    %427 = vmatpush.bf16.msra.mxu0 %v384
    %428 = vmatpush.bf16.msra.mxu0 %v383
    %429 = vmatmul.bf16.gmra.mxu0 %v116
    %v430 = vpop.f32.mrf.mxu0
    %v431 = vadd.f32 %v417, %v430
    %v432 = vpop.f32.mrf.mxu0
    %v433 = vadd.f32 %v419, %v432
    %434 = vdwg.mxu0
    %v435 = vmax.f32 %v431, 0.0
    %v436 = vmax.f32 %v433, 0.0
    %v437 = vpack.c.bf16 %v435, %v435
    %v438 = vpack.c.bf16 %v436, %v436
    %439 = vst [vmem:[#allocation10] sm:$0xf] %v437
    %440 = vst [vmem:[#allocation10 + $0x4] sm:$0xf] %v438
    // Predicated region
    $region46: #{tpu_custom_call.1} parent=1 // pred_check
      _
    $region47: #{tpu_custom_call.1} parent=1 // pred_check_branch
      %442 = sbr.rel (0) target = $region49
    $region48: #{tpu_custom_call.1} parent=1 // pred_region
      %444 = vsyncadd [#allocation4], 0
      %s445 = sshll.u32 [#allocation10], 4
      %s446 = int_to_ptr.vmem [resolvable:$true] %s445
      %s447 = sshll.u32 %s7, 4
      %s448 = int_to_ptr.hbm [resolvable:$true] %s447
      %453 = dma.vmem_to_hbm [thread:$0]  %s446, 128, %s448, [#allocation4], 64, 64, 4
    $region49: #{tpu_custom_call.1} parent=1 // pred_fallthru
      _
    // Predicated region
    $region50: #{tpu_custom_call.1} parent=1 // pred_check
      _
    $region51: #{tpu_custom_call.1} parent=1 // pred_check_branch
      %455 = sbr.rel (0) target = $region53
    $region52: #{tpu_custom_call.1} parent=1 // pred_region
      %457 = dma.done [#allocation4], 128
    $region53: #{tpu_custom_call.1} parent=1 // pred_fallthru
      _
    %458 = vsyncpa [#allocation3], 1
    %459 = vsyncpa [#allocation6], 1
    %460 = vsyncpa [#allocation9], 1
    %461 = vsyncpa [#allocation4], 1

</llo_original>
